<compile_context>
chip_gen: v5e
topology: v5e:2x2
jax: 0.10.0
libtpu: 0.0.40
codegen_flags: <defaults>
</compile_context>

<pallas_src>
import jax
import jax.numpy as jnp
from jax import lax
from jax.experimental import pallas as pl
from jax.experimental.pallas import tpu as pltpu

_LANE = 128


def _round_up(x, m):
    return (x + m - 1) // m * m


# ---------------------------------------------------------------------------
# Fused path: both layers in one grid-less kernel (small graphs).
# ---------------------------------------------------------------------------
def _gnn_fused_kernel(a1_ref, a2_ref, x_ref, w1_ref, b1_ref, w2_ref, b2_ref,
                      o_ref):
    def layer(a, h, w, b, relu):
        # a: [Nd, Ns] bf16 (0/1, exact), h: [Ns, Fin] f32, w: [Fin, Fout] f32.
        # norm='both': src -> out-degree (column sums), dst -> in-degree (row
        # sums), clamped to >= 1 (allow_zero_in_degree). f32 accumulation so
        # degrees > 256 stay exact even though A is bf16.
        out_deg = jnp.sum(a, axis=0, dtype=jnp.float32)                  # [Ns]
        in_deg = jnp.sum(a, axis=1, keepdims=True, dtype=jnp.float32)    # [Nd,1]
        src_norm = lax.rsqrt(jnp.maximum(out_deg, 1.0))                  # [Ns]
        dst_norm = lax.rsqrt(jnp.maximum(in_deg, 1.0))                   # [Nd,1]

        # Fold src_norm into H's rows (O(Ns*F)); never copy / upcast A.
        h_s = h * src_norm[:, None]                                      # [Ns,Fin]

        f_in, f_out = w.shape
        if f_in <= f_out:
            # Aggregate at the narrower width Fin, then project.
            agg = jnp.dot(a, h_s.astype(jnp.bfloat16),
                          preferred_element_type=jnp.float32)            # [Nd,Fin]
            h_out = jnp.dot(agg, w, preferred_element_type=jnp.float32)  # [Nd,Fout]
        else:
            # Project to the narrower width Fout first, then aggregate.
            hw = jnp.dot(h_s, w, preferred_element_type=jnp.float32)     # [Ns,Fout]
            h_out = jnp.dot(a, hw.astype(jnp.bfloat16),
                            preferred_element_type=jnp.float32)          # [Nd,Fout]

        h_out = h_out * dst_norm + b
        return jnp.maximum(h_out, 0.0) if relu else h_out

    h1 = layer(a1_ref[...], x_ref[...], w1_ref[...], b1_ref[...], relu=True)
    h2 = layer(a2_ref[...], h1, w2_ref[...], b2_ref[...], relu=False)
    o_ref[...] = h2.astype(o_ref.dtype)


def _forward_fused(adj1, adj2, features, params):
    (w1, b1), (w2, b2) = params
    n_dst2 = adj2.shape[0]
    f_out = w2.shape[1]
    f_out_p = _round_up(f_out, _LANE)  # lane-dense final store
    w2p = jnp.pad(w2.astype(jnp.float32), ((0, 0), (0, f_out_p - f_out)))
    b2p = jnp.pad(b2.reshape(1, -1).astype(jnp.float32),
                  ((0, 0), (0, f_out_p - f_out)))

    vmem = pl.BlockSpec(memory_space=pltpu.MemorySpace.VMEM)
    out = pl.pallas_call(
        _gnn_fused_kernel,
        out_shape=jax.ShapeDtypeStruct((n_dst2, f_out_p), jnp.float32),
        in_specs=[vmem] * 7,
        out_specs=vmem,
        compiler_params=pltpu.CompilerParams(vmem_limit_bytes=48 * 1024 * 1024),
    )(adj1, adj2, features.astype(jnp.float32),
      w1.astype(jnp.float32), b1.reshape(1, -1).astype(jnp.float32),
      w2p, b2p)
    return out[:, :f_out]


# ---------------------------------------------------------------------------
# Tiled path: one GraphConv layer per pallas_call, accumulate over Ns tiles.
# ---------------------------------------------------------------------------
def _make_tiled_layer_kernel(apply_w, relu):
    """acc += A_tile @ X_tile; on the last Ns tile apply dst_norm,
    (optionally) the W projection, bias, ReLU, and store the output tile."""
    if apply_w:
        def kernel(a_ref, x_ref, dn_ref, w_ref, b_ref, o_ref, acc_ref):
            k = pl.program_id(1)

            @pl.when(k == 0)
            def _init():
                acc_ref[...] = jnp.zeros_like(acc_ref)

            acc_ref[...] += jnp.dot(a_ref[...], x_ref[...],
                                    preferred_element_type=jnp.float32)

            @pl.when(k == pl.num_programs(1) - 1)
            def _finalize():
                h = acc_ref[...] * dn_ref[...]
                h = jnp.dot(h, w_ref[...], preferred_element_type=jnp.float32)
                h = h + b_ref[...]
                if relu:
                    h = jnp.maximum(h, 0.0)
                o_ref[...] = h.astype(o_ref.dtype)
    else:
        def kernel(a_ref, x_ref, dn_ref, b_ref, o_ref, acc_ref):
            k = pl.program_id(1)

            @pl.when(k == 0)
            def _init():
                acc_ref[...] = jnp.zeros_like(acc_ref)

            acc_ref[...] += jnp.dot(a_ref[...], x_ref[...],
                                    preferred_element_type=jnp.float32)

            @pl.when(k == pl.num_programs(1) - 1)
            def _finalize():
                h = acc_ref[...] * dn_ref[...] + b_ref[...]
                if relu:
                    h = jnp.maximum(h, 0.0)
                o_ref[...] = h.astype(o_ref.dtype)
    return kernel


def _graphconv_tiled(adj, h, w, b, *, relu, pad_out_to=None, tm=256, tk=256):
    """One GraphConv layer, tiled. Norms and the cheap O(Ns*F) src scaling are
    wrapper-side; the O(Nd*Ns*F) aggregation runs bf16 x bf16 (f32 acc) on the
    MXU inside the kernel with the Ns (reduction) grid axis last."""
    nd, ns = adj.shape
    f_in, f_out = w.shape
    w = w.astype(jnp.float32)
    b = b.reshape(1, -1).astype(jnp.float32)
    if pad_out_to is not None and pad_out_to > f_out:
        w = jnp.pad(w, ((0, 0), (0, pad_out_to - f_out)))
        b = jnp.pad(b, ((0, 0), (0, pad_out_to - f_out)))
    f_out_p = w.shape[1]

    # norm='both', degrees clamped to >= 1; f32 accumulation over the bf16 A.
    src_norm = lax.rsqrt(jnp.maximum(jnp.sum(adj, axis=0, dtype=jnp.float32), 1.0))
    dst_norm = lax.rsqrt(jnp.maximum(jnp.sum(adj, axis=1, dtype=jnp.float32), 1.0))
    dst_norm = dst_norm[:, None]                                       # [Nd, 1]

    h_s = h.astype(jnp.float32) * src_norm[:, None]                    # [Ns, Fin]
    project_first = f_in > f_out     # DGL ordering: fewer aggregation flops
    if project_first:
        x = jnp.dot(h_s, w, preferred_element_type=jnp.float32)        # [Ns, FoutP]
    else:
        x = h_s                                                        # [Ns, Fin]
    x = x.astype(jnp.bfloat16)
    f_x = x.shape[1]

    # Pad node counts to tile multiples (zero A rows/cols contribute nothing;
    # padded output rows are sliced off below).
    nd_p, ns_p = _round_up(nd, tm), _round_up(ns, tk)
    adj = jnp.pad(adj, ((0, nd_p - nd), (0, ns_p - ns)))
    x = jnp.pad(x, ((0, ns_p - ns), (0, 0)))
    dst_norm = jnp.pad(dst_norm, ((0, nd_p - nd), (0, 0)), constant_values=1.0)

    grid = (nd_p // tm, ns_p // tk)            # reduction (Ns) axis last
    in_specs = [
        pl.BlockSpec((tm, tk), lambda i, k: (i, k)),     # A tile (bf16)
        pl.BlockSpec((tk, f_x), lambda i, k: (k, 0)),    # X tile (bf16)
        pl.BlockSpec((tm, 1), lambda i, k: (i, 0)),      # dst_norm tile
    ]
    args = [adj, x, dst_norm]
    if not project_first:
        in_specs.append(pl.BlockSpec((f_in, f_out_p), lambda i, k: (0, 0)))
        args.append(w)
    in_specs.append(pl.BlockSpec((1, f_out_p), lambda i, k: (0, 0)))
    args.append(b)

    out = pl.pallas_call(
        _make_tiled_layer_kernel(apply_w=not project_first, relu=relu),
        out_shape=jax.ShapeDtypeStruct((nd_p, f_out_p), jnp.float32),
        grid=grid,
        in_specs=in_specs,
        out_specs=pl.BlockSpec((tm, f_out_p), lambda i, k: (i, 0)),
        scratch_shapes=[pltpu.VMEM((tm, f_x), jnp.float32)],
        compiler_params=pltpu.CompilerParams(
            dimension_semantics=("parallel", "arbitrary"),
            vmem_limit_bytes=32 * 1024 * 1024),
    )(*args)
    return out[:nd]      # drop padded rows; caller slices padded feature cols


# ---------------------------------------------------------------------------
# Public forward.
# ---------------------------------------------------------------------------
def gnn_forward(blocks, features, params, *, mode="auto"):
    """blocks: dense 0/1 block adjacencies [(Nd1,Ns1), (Nd2,Ns2)], Ns2 == Nd1.
    Prefer materializing the adjacency in bf16 upstream (0/1 is exact in bf16);
    non-0/1 edge weights would NOT be exact in bf16."""
    adj1, adj2 = blocks
    assert adj2.shape[1] == adj1.shape[0], \
        "block 2 src nodes must equal block 1 dst nodes"
    (w1, b1), (w2, b2) = params
    adj1 = adj1 if adj1.dtype == jnp.bfloat16 else adj1.astype(jnp.bfloat16)
    adj2 = adj2 if adj2.dtype == jnp.bfloat16 else adj2.astype(jnp.bfloat16)

    if mode == "auto":
        f_out_p = _round_up(w2.shape[1], _LANE)
        resident = (2 * (adj1.size + adj2.size)
                    + 4 * (features.size + adj1.shape[0] * w1.shape[1]
                           + adj2.shape[0] * f_out_p))
        mode = "fused" if resident <= 8 * 1024 * 1024 else "tiled"

    if mode == "fused":
        return _forward_fused(adj1, adj2, features, params)

    h1 = _graphconv_tiled(adj1, features, w1, b1, relu=True)
    h2 = _graphconv_tiled(adj2, h1, w2, b2, relu=False,
                          pad_out_to=_round_up(w2.shape[1], _LANE))
    return h2[:, :w2.shape[1]]


def init_params(key, in_feats, hidden_size, out_feats):
    # Xavier-uniform weights (DGL default), zero bias.
    k1, k2 = jax.random.split(key)

    def xavier(k, fan_in, fan_out):
        limit = (6.0 / (fan_in + fan_out)) ** 0.5
        return jax.random.uniform(k, (fan_in, fan_out), jnp.float32, -limit, limit)

    w1 = xavier(k1, in_feats, hidden_size)
    b1 = jnp.zeros((hidden_size,), jnp.float32)
    w2 = xavier(k2, hidden_size, out_feats)
    b2 = jnp.zeros((out_feats,), jnp.float32)
    return ((w1, b1), (w2, b2))


# Pure-JAX reference of the same math (DGL GraphConv, norm='both').
def _ref_layer(adj, x, w, b, relu):
    sn = lax.rsqrt(jnp.maximum(adj.sum(0), 1.0))
    dn = lax.rsqrt(jnp.maximum(adj.sum(1), 1.0))
    h = (adj @ (x * sn[:, None])) * dn[:, None]
    h = h @ w + b
    return jnp.maximum(h, 0.0) if relu else h


if __name__ == "__main__":
    in_feats, hidden_size, out_feats = 16, 64, 8

    key = jax.random.PRNGKey(0)
    k_feat, k_a1, k_a2, k_par, k_feat2, k_b1, k_b2 = jax.random.split(key, 7)
    params = init_params(k_par, in_feats, hidden_size, out_feats)
    (w1, b1), (w2, b2) = params

    def ref_gnn(a1_f32, a2_f32, feats):
        h = _ref_layer(a1_f32, feats, w1, b1, True)
        return _ref_layer(a2_f32, h, w2, b2, False)

    # --- small graph: fully fused kernel ------------------------------------
    n_src1, n_dst1, n_dst2 = 32, 16, 8
    feats = jax.random.normal(k_feat, (n_src1, in_feats), jnp.float32)
    m1 = jax.random.uniform(k_a1, (n_dst1, n_src1)) < 0.35
    m2 = jax.random.uniform(k_a2, (n_dst2, n_dst1)) < 0.35
    # Adjacency materialized ONCE upstream in bf16 (0/1 exact).
    adj1, adj2 = m1.astype(jnp.bfloat16), m2.astype(jnp.bfloat16)

    out = gnn_forward([adj1, adj2], feats, params)
    jax.block_until_ready(out)
    assert out.shape == (n_dst2, out_feats) and out.dtype == jnp.float32
    ref = ref_gnn(m1.astype(jnp.float32), m2.astype(jnp.float32), feats)
    assert jnp.allclose(out, ref, atol=2e-2, rtol=2e-2), \
        f"fused: max abs diff {jnp.max(jnp.abs(out - ref))}"

    # --- larger graph: tiled per-layer path (the structure v7x needs) -------
    N_src1, N_dst1, N_dst2 = 1024, 512, 256
    feats_l = jax.random.normal(k_feat2, (N_src1, in_feats), jnp.float32)
    M1 = jax.random.uniform(k_b1, (N_dst1, N_src1)) < 0.05
    M2 = jax.random.uniform(k_b2, (N_dst2, N_dst1)) < 0.05
    out_l = gnn_forward([M1.astype(jnp.bfloat16), M2.astype(jnp.bfloat16)],
                        feats_l, params, mode="tiled")
    jax.block_until_ready(out_l)
    assert out_l.shape == (N_dst2, out_feats) and out_l.dtype == jnp.float32
    ref_l = ref_gnn(M1.astype(jnp.float32), M2.astype(jnp.float32), feats_l)
    assert jnp.allclose(out_l, ref_l, atol=5e-2, rtol=5e-2), \
        f"tiled: max abs diff {jnp.max(jnp.abs(out_l - ref_l))}"

    print("KERNEL_OK")
</pallas_src>

<mosaic_0001>
module attributes {stable_mosaic.version = 11 : i64} {
  func.func @_gnn_fused_kernel(%arg0: memref<16x32xbf16, #tpu.memory_space<vmem>>, %arg1: memref<8x16xbf16, #tpu.memory_space<vmem>>, %arg2: memref<32x16xf32, #tpu.memory_space<vmem>>, %arg3: memref<16x64xf32, #tpu.memory_space<vmem>>, %arg4: memref<1x64xf32, #tpu.memory_space<vmem>>, %arg5: memref<64x128xf32, #tpu.memory_space<vmem>>, %arg6: memref<1x128xf32, #tpu.memory_space<vmem>>, %arg7: memref<8x128xf32, #tpu.memory_space<vmem>>) attributes {dimension_semantics = [], scalar_prefetch = 0 : i64, scratch_operands = 0 : i64, tpu.core_type = #tpu.core_type<tc>} {
    %c0 = arith.constant 0 : index
    %c0_0 = arith.constant 0 : index
    %0 = vector.load %arg0[%c0, %c0_0] : memref<16x32xbf16, #tpu.memory_space<vmem>>, vector<16x32xbf16>
    %c0_1 = arith.constant 0 : index
    %c0_2 = arith.constant 0 : index
    %1 = vector.load %arg2[%c0_1, %c0_2] : memref<32x16xf32, #tpu.memory_space<vmem>>, vector<32x16xf32>
    %c0_3 = arith.constant 0 : index
    %c0_4 = arith.constant 0 : index
    %2 = vector.load %arg3[%c0_3, %c0_4] : memref<16x64xf32, #tpu.memory_space<vmem>>, vector<16x64xf32>
    %c0_5 = arith.constant 0 : index
    %c0_6 = arith.constant 0 : index
    %3 = vector.load %arg4[%c0_5, %c0_6] : memref<1x64xf32, #tpu.memory_space<vmem>>, vector<1x64xf32>
    %4 = arith.extf %0 : vector<16x32xbf16> to vector<16x32xf32>
    %cst = arith.constant dense<0.000000e+00> : vector<32xf32>
    %5 = vector.multi_reduction <add>, %4, %cst [0] : vector<16x32xf32> to vector<32xf32>
    %6 = arith.extf %0 : vector<16x32xbf16> to vector<16x32xf32>
    %cst_7 = arith.constant dense<0.000000e+00> : vector<16xf32>
    %7 = vector.multi_reduction <add>, %6, %cst_7 [1] : vector<16x32xf32> to vector<16xf32>
    %8 = vector.shape_cast %7 : vector<16xf32> to vector<16x1xf32>
    %cst_8 = arith.constant 1.000000e+00 : f32
    %9 = vector.broadcast %cst_8 : f32 to vector<32xf32>
    %10 = arith.maximumf %5, %9 : vector<32xf32>
    %11 = math.rsqrt %10 : vector<32xf32>
    %cst_9 = arith.constant 1.000000e+00 : f32
    %12 = vector.broadcast %cst_9 : f32 to vector<16x1xf32>
    %13 = arith.maximumf %8, %12 : vector<16x1xf32>
    %14 = math.rsqrt %13 : vector<16x1xf32>
    %15 = vector.shape_cast %11 : vector<32xf32> to vector<32x1xf32>
    %16 = vector.broadcast %15 : vector<32x1xf32> to vector<32x16xf32>
    %17 = arith.mulf %1, %16 : vector<32x16xf32>
    %18 = arith.truncf %17 : vector<32x16xf32> to vector<32x16xbf16>
    %cst_10 = arith.constant dense<0.000000e+00> : vector<16x16xf32>
    %19 = tpu.matmul %0, %18, %cst_10 {dimension_numbers = #tpu.dot_dimension_numbers<[1], [0], [0], [1], [0, 0, 1, 1], [], []>} : vector<16x32xbf16>, vector<32x16xbf16>, vector<16x16xf32> -> vector<16x16xf32>
    %cst_11 = arith.constant dense<0.000000e+00> : vector<16x64xf32>
    %20 = tpu.matmul %19, %2, %cst_11 {dimension_numbers = #tpu.dot_dimension_numbers<[1], [0], [0], [1], [0, 0, 1, 1], [], []>} : vector<16x16xf32>, vector<16x64xf32>, vector<16x64xf32> -> vector<16x64xf32>
    %21 = vector.broadcast %14 : vector<16x1xf32> to vector<16x64xf32>
    %22 = arith.mulf %20, %21 : vector<16x64xf32>
    %23 = vector.broadcast %3 : vector<1x64xf32> to vector<16x64xf32>
    %24 = arith.addf %22, %23 : vector<16x64xf32>
    %cst_12 = arith.constant 0.000000e+00 : f32
    %25 = vector.broadcast %cst_12 : f32 to vector<16x64xf32>
    %26 = arith.maximumf %24, %25 : vector<16x64xf32>
    %c0_13 = arith.constant 0 : index
    %c0_14 = arith.constant 0 : index
    %27 = vector.load %arg1[%c0_13, %c0_14] : memref<8x16xbf16, #tpu.memory_space<vmem>>, vector<8x16xbf16>
    %c0_15 = arith.constant 0 : index
    %c0_16 = arith.constant 0 : index
    %28 = vector.load %arg5[%c0_15, %c0_16] : memref<64x128xf32, #tpu.memory_space<vmem>>, vector<64x128xf32>
    %c0_17 = arith.constant 0 : index
    %c0_18 = arith.constant 0 : index
    %29 = vector.load %arg6[%c0_17, %c0_18] : memref<1x128xf32, #tpu.memory_space<vmem>>, vector<1x128xf32>
    %30 = arith.extf %27 : vector<8x16xbf16> to vector<8x16xf32>
    %cst_19 = arith.constant dense<0.000000e+00> : vector<16xf32>
    %31 = vector.multi_reduction <add>, %30, %cst_19 [0] : vector<8x16xf32> to vector<16xf32>
    %32 = arith.extf %27 : vector<8x16xbf16> to vector<8x16xf32>
    %cst_20 = arith.constant dense<0.000000e+00> : vector<8xf32>
    %33 = vector.multi_reduction <add>, %32, %cst_20 [1] : vector<8x16xf32> to vector<8xf32>
    %34 = vector.shape_cast %33 : vector<8xf32> to vector<8x1xf32>
    %cst_21 = arith.constant 1.000000e+00 : f32
    %35 = vector.broadcast %cst_21 : f32 to vector<16xf32>
    %36 = arith.maximumf %31, %35 : vector<16xf32>
    %37 = math.rsqrt %36 : vector<16xf32>
    %cst_22 = arith.constant 1.000000e+00 : f32
    %38 = vector.broadcast %cst_22 : f32 to vector<8x1xf32>
    %39 = arith.maximumf %34, %38 : vector<8x1xf32>
    %40 = math.rsqrt %39 : vector<8x1xf32>
    %41 = vector.shape_cast %37 : vector<16xf32> to vector<16x1xf32>
    %42 = vector.broadcast %41 : vector<16x1xf32> to vector<16x64xf32>
    %43 = arith.mulf %26, %42 : vector<16x64xf32>
    %44 = arith.truncf %43 : vector<16x64xf32> to vector<16x64xbf16>
    %cst_23 = arith.constant dense<0.000000e+00> : vector<8x64xf32>
    %45 = tpu.matmul %27, %44, %cst_23 {dimension_numbers = #tpu.dot_dimension_numbers<[1], [0], [0], [1], [0, 0, 1, 1], [], []>} : vector<8x16xbf16>, vector<16x64xbf16>, vector<8x64xf32> -> vector<8x64xf32>
    %cst_24 = arith.constant dense<0.000000e+00> : vector<8x128xf32>
    %46 = tpu.matmul %45, %28, %cst_24 {dimension_numbers = #tpu.dot_dimension_numbers<[1], [0], [0], [1], [0, 0, 1, 1], [], []>} : vector<8x64xf32>, vector<64x128xf32>, vector<8x128xf32> -> vector<8x128xf32>
    %47 = vector.broadcast %40 : vector<8x1xf32> to vector<8x128xf32>
    %48 = arith.mulf %46, %47 : vector<8x128xf32>
    %49 = vector.broadcast %29 : vector<1x128xf32> to vector<8x128xf32>
    %50 = arith.addf %48, %49 : vector<8x128xf32>
    %c0_25 = arith.constant 0 : index
    %c0_26 = arith.constant 0 : index
    %51 = vector.load %arg7[%c0_25, %c0_26] : memref<8x128xf32, #tpu.memory_space<vmem>>, vector<8x128xf32>
    tpu.vector_store %arg7[%c0_25, %c0_26], %50 {strides = array<i32>} : memref<8x128xf32, #tpu.memory_space<vmem>>, vector<8x128xf32>,
    return
  }
}

</mosaic_0001>

<llo_original>
// kernel: tpu_custom_call.1
$region0: #{tpu_custom_call.1}
  #allocation0 [shape = 'u32[]', space=smem, size = 0x4, offset = 0x4, fixed_abs, tag = 'smem constant byte address 0x4 - core index']
  #allocation1 [shape = 'u32[72,128]{1,0:T(1,128)}', space=vmem, size = 0x9000, scoped, tag = 'internal scratch']
  %s0 = inlined_call_operand.vmem [shape: bf16[16,32], index: 0, kind: input, shape index: {}]
  %s1 = inlined_call_operand.vmem [shape: bf16[8,16], index: 1, kind: input, shape index: {}]
  %s2 = inlined_call_operand.vmem [shape: f32[32,16], index: 2, kind: input, shape index: {}]
  %s3 = inlined_call_operand.vmem [shape: f32[16,64], index: 3, kind: input, shape index: {}]
  %s4 = inlined_call_operand.vmem [shape: f32[1,64], index: 4, kind: input, shape index: {}]
  %s5 = inlined_call_operand.hbm [shape: f32[64,128], index: 5, kind: input, shape index: {}]
  %s6 = inlined_call_operand.vmem [shape: f32[1,128], index: 6, kind: input, shape index: {}]
  %s7 = inlined_call_operand.hbm [shape: f32[8,128], index: 7, kind: output, shape index: {}]
  %s8 = sld [smem:[#allocation0]]
  $region42: #{tpu_custom_call.1} parent=0
    _
  %s10 = ssub.s32 1, %s8
  %s11 = scalar_select 0, %s10, %s8
  $region1: #{tpu_custom_call.1} parent=0
    #allocation2 [shape = 'u8[32768]{0}', space=vmem, size = 0x8000, scoped, tag = 'input window, operand 5, single buffered']
    #allocation3 [shape = 's32[1]{0}', space=sflag, size = 0x4, scoped, tag = 'scoped memory for tpu_custom_call.1']
    #allocation4 [shape = 's32[1]{0}', space=sflag, size = 0x4, scoped, tag = 'scoped memory for tpu_custom_call.1']
    #allocation5 [shape = 'u8[4096]{0}', space=vmem, size = 0x1000, scoped, tag = 'output window, operand 0, single buffered']
    %12 = vsyncpa [#allocation3], 0
    %13 = vsyncpa [#allocation4], 0
    // Predicated region
    $region2: #{tpu_custom_call.1} parent=1 // pred_check
      _
    $region3: #{tpu_custom_call.1} parent=1 // pred_check_branch
      %15 = sbr.rel (0) target = $region5
    $region4: #{tpu_custom_call.1} parent=1 // pred_region
      _
    $region5: #{tpu_custom_call.1} parent=1 // pred_fallthru
      _
    // Predicated region
    $region6: #{tpu_custom_call.1} parent=1 // pred_check
      _
    $region7: #{tpu_custom_call.1} parent=1 // pred_check_branch
      %17 = sbr.rel (0) target = $region9
    $region8: #{tpu_custom_call.1} parent=1 // pred_region
      _
    $region9: #{tpu_custom_call.1} parent=1 // pred_fallthru
      _
    // Predicated region
    $region10: #{tpu_custom_call.1} parent=1 // pred_check
      _
    $region11: #{tpu_custom_call.1} parent=1 // pred_check_branch
      %19 = sbr.rel (0) target = $region13
    $region12: #{tpu_custom_call.1} parent=1 // pred_region
      _
    $region13: #{tpu_custom_call.1} parent=1 // pred_fallthru
      _
    // Predicated region
    $region14: #{tpu_custom_call.1} parent=1 // pred_check
      _
    $region15: #{tpu_custom_call.1} parent=1 // pred_check_branch
      %21 = sbr.rel (0) target = $region17
    $region16: #{tpu_custom_call.1} parent=1 // pred_region
      _
    $region17: #{tpu_custom_call.1} parent=1 // pred_fallthru
      _
    // Predicated region
    $region18: #{tpu_custom_call.1} parent=1 // pred_check
      _
    $region19: #{tpu_custom_call.1} parent=1 // pred_check_branch
      %23 = sbr.rel (0) target = $region21
    $region20: #{tpu_custom_call.1} parent=1 // pred_region
      _
    $region21: #{tpu_custom_call.1} parent=1 // pred_fallthru
      _
    // Predicated region
    $region22: #{tpu_custom_call.1} parent=1 // pred_check
      _
    $region23: #{tpu_custom_call.1} parent=1 // pred_check_branch
      %25 = sbr.rel (0) target = $region25
    $region24: #{tpu_custom_call.1} parent=1 // pred_region
      %27 = vsyncadd [#allocation3], 0
      %s28 = sshll.u32 %s5, 4
      %s29 = int_to_ptr.hbm [resolvable:$true] %s28
      %s30 = sshll.u32 [#allocation2], 4
      %s31 = int_to_ptr.vmem [resolvable:$true] %s30
      %36 = dma.hbm_to_vmem [thread:$0]  %s29, 1024, %s31, [#allocation3], 128, 128, 8
    $region25: #{tpu_custom_call.1} parent=1 // pred_fallthru
      _
    // Predicated region
    $region26: #{tpu_custom_call.1} parent=1 // pred_check
      _
    $region27: #{tpu_custom_call.1} parent=1 // pred_check_branch
      %38 = sbr.rel (0) target = $region29
    $region28: #{tpu_custom_call.1} parent=1 // pred_region
      _
    $region29: #{tpu_custom_call.1} parent=1 // pred_fallthru
      _
    // Predicated region
    $region30: #{tpu_custom_call.1} parent=1 // pred_check
      _
    $region31: #{tpu_custom_call.1} parent=1 // pred_check_branch
      %40 = sbr.rel (0) target = $region33
    $region32: #{tpu_custom_call.1} parent=1 // pred_region
      %42 = dma.done [#allocation3], 1024
    $region33: #{tpu_custom_call.1} parent=1 // pred_fallthru
      _
    %v44 = vld [vmem:[%s0] sm:$0xf]
    %v45 = vld [vmem:[%s0 + $0x4] sm:$0xf]
    %v46 = vld [vmem:[%s2] sm:$0xff]
    %v47 = vld [vmem:[%s2 + $0x8] sm:$0xff]
    %v48 = vld [vmem:[%s2 + $0x10] sm:$0xff]
    %v49 = vld [vmem:[%s2 + $0x18] sm:$0xff]
    %v50 = vld [vmem:[%s3] sm:$0xff]
    %v51 = vld [vmem:[%s3 + $0x8] sm:$0xff]
    %v52 = vld [vmem:[%s4] sm:$0x1]
    %v53 = vunpack.c.l.bf16 %v44
    %v54 = vunpack.c.l.bf16 %v45
    %vm55 = vcmask 261120
    %v56 = vsel %vm55, %v53, 0.0
    %v57 = vsel %vm55, %v54, 0.0
    %v58 = vadd.f32 %v56, %v57
    %v59 = vrot.slane %v58, 4
    %v60 = vadd.f32 %v58, %v59
    %v61 = vrot.slane %v60, 2
    %v62 = vadd.f32 %v60, %v61
    %v63 = vrot.slane %v62, 1
    %v64 = vadd.f32 %v62, %v63
    %65 = vadd.xlane.f32.xlu0 %v56
    %v66 = vpop.xlane.xlu0 %65
    %67 = vadd.xlane.f32.xlu0 %v57
    %v68 = vpop.xlane.xlu0 %67
    %v69 = vmax.f32 %v64, 1.0
    %v70 = vrsqrt.pop %v69
    %v71 = vmul.f32 %v70, %v69
    %v72 = vmul.f32 %v71, %v70
    %v73 = vmul.f32 0.5, %v72
    %v74 = vsub.f32 1.5, %v73
    %v75 = vmul.f32 %v70, %v74
    %vm76 = vweird.f32 %v69
    %vm77 = vweird.f32 %v70
    %vm78 = vmor %vm76, %vm77
    %v79 = vsel %vm78, %v70, %v75
    %v80 = vmax.f32 %v66, 1.0
    %v81 = vmax.f32 %v68, 1.0
    %v82 = vrsqrt.pop %v80
    %v83 = vmul.f32 %v82, %v80
    %v84 = vmul.f32 %v83, %v82
    %v85 = vmul.f32 0.5, %v84
    %v86 = vsub.f32 1.5, %v85
    %v87 = vmul.f32 %v82, %v86
    %vm88 = vweird.f32 %v80
    %vm89 = vweird.f32 %v82
    %vm90 = vmor %vm88, %vm89
    %v91 = vsel %vm90, %v82, %v87
    %v92 = vrsqrt.pop %v81
    %v93 = vmul.f32 %v92, %v81
    %v94 = vmul.f32 %v93, %v92
    %v95 = vmul.f32 0.5, %v94
    %v96 = vsub.f32 1.5, %v95
    %v97 = vmul.f32 %v92, %v96
    %vm98 = vweird.f32 %v81
    %vm99 = vweird.f32 %v92
    %vm100 = vmor %vm98, %vm99
    %v101 = vsel %vm100, %v92, %v97
    %v102 = vlaneseq
    %v103 = vshrl.u32 %v102, 7
    %105 = vset.pattern.permute.xlu0 %v103
    %106 = vperm.xlu0 %105, %v79
    %v107 = vpop.permute.xlu0 %106
    %v108 = vlaneseq
    %v109 = vshrl.u32 %v108, 7
    %v110 = vadd.s32 %v109, 8
    %111 = vset.pattern.permute.xlu0 %v110
    %112 = vperm.xlu0 %111, %v79
    %v113 = vpop.permute.xlu0 %112
    %v114 = vlaneseq
    %v115 = vshrl.u32 %v114, 7
    %v116 = vadd.s32 %v115, 16
    %117 = vset.pattern.permute.xlu0 %v116
    %118 = vperm.xlu0 %117, %v79
    %v119 = vpop.permute.xlu0 %118
    %v120 = vlaneseq
    %v121 = vshrl.u32 %v120, 7
    %v122 = vadd.s32 %v121, 24
    %123 = vset.pattern.permute.xlu0 %v122
    %124 = vperm.xlu0 %123, %v79
    %v125 = vpop.permute.xlu0 %124
    %v126 = vmul.f32 %v46, %v107
    %v127 = vmul.f32 %v47, %v113
    %v128 = vmul.f32 %v48, %v119
    %v129 = vmul.f32 %v49, %v125
    %v130 = vpack.c.bf16 %v127, %v126
    %v131 = vpack.c.bf16 %v129, %v128
    %v134 = vunpack.c.l.b16 %v44
    %v135 = vunpack.c.l.b16 %v45
    %v136 = vpack.c.b16 %v135, %v134
    %v138 = vsel %vm55, %v136, 0
    %140 = vmatpush.bf16.msra.mxu0 0
    %141 = vmatpush.bf16.msra.mxu0 0
    %142 = vmatpush.bf16.msra.mxu0 0
    %143 = vmatpush.bf16.msra.mxu0 0
    %144 = vmatpush.bf16.msra.mxu0 0
    %145 = vmatpush.bf16.msra.mxu0 0
    %146 = vmatpush.bf16.msra.mxu0 %v131
    %147 = vmatpush.bf16.msra.mxu0 %v130
    %148 = vmatmul.bf16.gmra.mxu0 %v138
    %v149 = vpop.f32.mrf.mxu0
    %v150 = vadd.f32 0.0, %v149
    %v151 = vpop.f32.mrf.mxu0
    %v152 = vadd.f32 0.0, %v151
    %153 = vdwg.mxu0
    %vm154 = vcmask 130048
    %v156 = vsel %vm154, %v150, 0
    %v159 = vsel %vm154, %v152, 0
    %161 = vmatpush.msra.mxu0 0.0
    %162 = vmatpush.msra.mxu0 0.0
    %163 = vmatpush.msra.mxu0 0.0
    %164 = vmatpush.msra.mxu0 0.0
    %165 = vmatpush.msra.mxu0 0.0
    %166 = vmatpush.msra.mxu0 0.0
    %167 = vmatpush.msra.mxu0 0.0
    %168 = vmatpush.msra.mxu0 0.0
    %169 = vmatpush.msra.mxu0 0.0
    %170 = vmatpush.msra.mxu0 0.0
    %171 = vmatpush.msra.mxu0 0.0
    %172 = vmatpush.msra.mxu0 0.0
    %173 = vmatpush.msra.mxu0 0.0
    %174 = vmatpush.msra.mxu0 0.0
    %175 = vmatpush.msra.mxu0 %v51
    %176 = vmatpush.msra.mxu0 %v50
    %177 = vmatmul.f32.gmra.mxu0 %v156
    %v178 = vpop.f32.mrf.mxu0
    %v179 = vadd.f32 0.0, %v178
    %180 = vmatmul.f32.gmra.mxu0 %v159
    %v181 = vpop.f32.mrf.mxu0
    %v182 = vadd.f32 0.0, %v181
    %183 = vdwg.mxu0
    %v184 = vmul.f32 %v179, %v91
    %v185 = vmul.f32 %v182, %v101
    %v187 = vperm.slane %v52, 0
    %v189 = vadd.f32 %v184, %v187
    %v190 = vadd.f32 %v185, %v187
    %v191 = vmax.f32 %v189, 0.0
    %v192 = vmax.f32 %v190, 0.0
    %v193 = vld [vmem:[%s1] sm:$0xf]
    %v194 = vld [vmem:[#allocation2] sm:$0xff]
    %v195 = vld [vmem:[#allocation2 + $0x8] sm:$0xff]
    %v196 = vld [vmem:[#allocation2 + $0x10] sm:$0xff]
    %v197 = vld [vmem:[#allocation2 + $0x18] sm:$0xff]
    %v198 = vld [vmem:[#allocation2 + $0x20] sm:$0xff]
    %v199 = vld [vmem:[#allocation2 + $0x28] sm:$0xff]
    %v200 = vld [vmem:[#allocation2 + $0x30] sm:$0xff]
    %v201 = vld [vmem:[#allocation2 + $0x38] sm:$0xff]
    %v202 = vld [vmem:[%s6] sm:$0x1]
    %v203 = vunpack.c.l.bf16 %v193
    %v204 = vsel %vm154, %v203, 0.0
    %v205 = vrot.slane %v204, 4
    %v206 = vadd.f32 %v204, %v205
    %v207 = vrot.slane %v206, 2
    %v208 = vadd.f32 %v206, %v207
    %v209 = vrot.slane %v208, 1
    %v210 = vadd.f32 %v208, %v209
    %211 = vadd.xlane.f32.xlu0 %v204
    %v212 = vpop.xlane.xlu0 %211
    %v213 = vmax.f32 %v210, 1.0
    %v214 = vrsqrt.pop %v213
    %v215 = vmul.f32 %v214, %v213
    %v216 = vmul.f32 %v215, %v214
    %v217 = vmul.f32 0.5, %v216
    %v218 = vsub.f32 1.5, %v217
    %v219 = vmul.f32 %v214, %v218
    %vm220 = vweird.f32 %v213
    %vm221 = vweird.f32 %v214
    %vm222 = vmor %vm220, %vm221
    %v223 = vsel %vm222, %v214, %v219
    %v224 = vmax.f32 %v212, 1.0
    %v225 = vrsqrt.pop %v224
    %v226 = vmul.f32 %v225, %v224
    %v227 = vmul.f32 %v226, %v225
    %v228 = vmul.f32 0.5, %v227
    %v229 = vsub.f32 1.5, %v228
    %v230 = vmul.f32 %v225, %v229
    %vm231 = vweird.f32 %v224
    %vm232 = vweird.f32 %v225
    %vm233 = vmor %vm231, %vm232
    %v234 = vsel %vm233, %v225, %v230
    %v235 = vlaneseq
    %v236 = vshrl.u32 %v235, 7
    %238 = vset.pattern.permute.xlu0 %v236
    %239 = vperm.xlu0 %238, %v223
    %v240 = vpop.permute.xlu0 %239
    %v241 = vlaneseq
    %v242 = vshrl.u32 %v241, 7
    %v243 = vadd.s32 %v242, 8
    %244 = vset.pattern.permute.xlu0 %v243
    %245 = vperm.xlu0 %244, %v223
    %v246 = vpop.permute.xlu0 %245
    %v247 = vmul.f32 %v191, %v240
    %v248 = vmul.f32 %v192, %v246
    %v249 = vpack.c.bf16 %v248, %v247
    %v251 = vsel %vm154, %v193, 0
    %253 = vmatpush.bf16.msra.mxu0 0
    %254 = vmatpush.bf16.msra.mxu0 0
    %255 = vmatpush.bf16.msra.mxu0 0
    %256 = vmatpush.bf16.msra.mxu0 0
    %257 = vmatpush.bf16.msra.mxu0 0
    %258 = vmatpush.bf16.msra.mxu0 0
    %259 = vmatpush.bf16.msra.mxu0 0
    %260 = vmatpush.bf16.msra.mxu0 %v249
    %261 = vmatmul.bf16.gmra.mxu0 %v251
    %v262 = vpop.f32.mrf.mxu0
    %v263 = vadd.f32 0.0, %v262
    %v264 = vpop.f32.mrf.mxu0
    %265 = vdwg.mxu0
    %vm266 = vcmask 523264
    %v268 = vsel %vm266, %v263, 0
    %270 = vmatpush.msra.mxu0 0.0
    %271 = vmatpush.msra.mxu0 0.0
    %272 = vmatpush.msra.mxu0 0.0
    %273 = vmatpush.msra.mxu0 0.0
    %274 = vmatpush.msra.mxu0 0.0
    %275 = vmatpush.msra.mxu0 0.0
    %276 = vmatpush.msra.mxu0 0.0
    %277 = vmatpush.msra.mxu0 0.0
    %278 = vmatpush.msra.mxu0 %v201
    %279 = vmatpush.msra.mxu0 %v200
    %280 = vmatpush.msra.mxu0 %v199
    %281 = vmatpush.msra.mxu0 %v198
    %282 = vmatpush.msra.mxu0 %v197
    %283 = vmatpush.msra.mxu0 %v196
    %284 = vmatpush.msra.mxu0 %v195
    %285 = vmatpush.msra.mxu0 %v194
    %286 = vmatmul.f32.gmra.mxu0 %v268
    %v287 = vpop.f32.mrf.mxu0
    %v288 = vadd.f32 0.0, %v287
    %289 = vdwg.mxu0
    %v290 = vmul.f32 %v288, %v234
    %v292 = vperm.slane %v202, 0
    %v294 = vadd.f32 %v290, %v292
    %295 = vst [vmem:[#allocation5] sm:$0xff] %v294
    // Predicated region
    $region34: #{tpu_custom_call.1} parent=1 // pred_check
      _
    $region35: #{tpu_custom_call.1} parent=1 // pred_check_branch
      %297 = sbr.rel (0) target = $region37
    $region36: #{tpu_custom_call.1} parent=1 // pred_region
      %299 = vsyncadd [#allocation4], 0
      %s301 = sshll.u32 [#allocation5], 4
      %s302 = int_to_ptr.vmem [resolvable:$true] %s301
      %s303 = sshll.u32 %s7, 4
      %s304 = int_to_ptr.hbm [resolvable:$true] %s303
      %306 = dma.vmem_to_hbm [thread:$0]  %s302, 128, %s304, [#allocation4]
    $region37: #{tpu_custom_call.1} parent=1 // pred_fallthru
      _
    // Predicated region
    $region38: #{tpu_custom_call.1} parent=1 // pred_check
      _
    $region39: #{tpu_custom_call.1} parent=1 // pred_check_branch
      %308 = sbr.rel (0) target = $region41
    $region40: #{tpu_custom_call.1} parent=1 // pred_region
      %310 = dma.done [#allocation4], 128
    $region41: #{tpu_custom_call.1} parent=1 // pred_fallthru
      _
    %311 = vsyncpa [#allocation3], 1
    %312 = vsyncpa [#allocation4], 1

</llo_original>
